<compile_context>
chip_gen: v5e
topology: v5e:2x2
jax: 0.10.0
libtpu: 0.0.40
codegen_flags: <defaults>
</compile_context>

<pallas_src>
import math

import numpy as np
import jax
import jax.numpy as jnp
from jax.experimental import pallas as pl
from jax.experimental.pallas import tpu as pltpu

# ------------------------- configuration (module defaults, small image) -------------
B = 2
IN_CH = 3                      # input_channel = 3
IMG = 16                       # input_size (kept small; module default is 32)
PATCH = 4                      # patch_size
HID = 8 * 8 * 3                # hidden_size = 192
NPATCH = (IMG // PATCH) ** 2   # 16 patches
N = NPATCH + 1                 # 17 tokens (cls + patches)
PD = PATCH * PATCH * IN_CH     # 48 = flattened patch dim fed to the projection


# ------------------------------- Pallas kernel ---------------------------------------
def embedding_kernel(x_ref, posc_ref, w_ref, out_ref):
    """One image per grid step.

    x_ref    : (1, N, PD)  f32  -- row 0 is a zero 'cls slot', rows 1.. are patches
    posc_ref : (N, HID)    f32  -- positional table with cls_token folded into row 0
    w_ref    : (PD, HID)   bf16 -- projection weight (transposed; Linear has no bias)
    out_ref  : (1, N, HID) f32
    """
    w = w_ref[...].astype(jnp.float32)          # cheap VPU convert; DMA was bf16
    out_ref[0] = (jnp.dot(x_ref[0], w, preferred_element_type=jnp.float32)
                  + posc_ref[...])


# ------------------------------- wrapper / glue --------------------------------------
def _rearrange_patches(x_nchw):
    """einops 'b c (h p1) (w p2) -> b (h w) (c p1 p2)' with p1 = p2 = PATCH."""
    Bb, C, Him, Wim = x_nchw.shape
    hh, ww = Him // PATCH, Wim // PATCH
    p = x_nchw.reshape(Bb, C, hh, PATCH, ww, PATCH)
    p = p.transpose(0, 2, 4, 1, 3, 5)           # (b, h, w, c, p1, p2)
    return p.reshape(Bb, hh * ww, C * PATCH * PATCH)


def embedding_forward(x_nchw, params):
    Bb = x_nchw.shape[0]
    patches = _rearrange_patches(x_nchw)

    # Prepend a zero row so the cls slot comes out of the same full-tile matmul.
    x_aug = jnp.concatenate([jnp.zeros((Bb, 1, PD), jnp.float32), patches], axis=1)
    # cat(cls, proj(x)) + pos  ==  [zero-row | patches] @ W  +  (pos with cls in row 0)
    posc = params['pos'].at[0].add(params['cls'])
    w_bf16 = params['proj_w'].astype(jnp.bfloat16)   # halve weight-DMA bytes

    return pl.pallas_call(
        embedding_kernel,
        out_shape=jax.ShapeDtypeStruct((Bb, N, HID), jnp.float32),
        grid_spec=pltpu.PrefetchScalarGridSpec(
            num_scalar_prefetch=0,
            grid=(Bb,),
            in_specs=[
                pl.BlockSpec((1, N, PD), lambda b: (b, 0, 0)),   # per-image tokens
                pl.BlockSpec((N, HID), lambda b: (0, 0)),        # positional (+cls)
                pl.BlockSpec((PD, HID), lambda b: (0, 0)),       # projection weight
            ],
            out_specs=pl.BlockSpec((1, N, HID), lambda b: (b, 0, 0)),
        ),
        compiler_params=pltpu.CompilerParams(
            # Batch iterations are fully independent -> parallel (v7x megacore split).
            dimension_semantics=("parallel",),
        ),
    )(x_aug, posc, w_bf16)


# ------------------------------- pure-JAX reference ----------------------------------
def embedding_reference(x_nchw, params):
    Bb = x_nchw.shape[0]
    patches = _rearrange_patches(x_nchw)
    proj = patches @ params['proj_w']                       # exact f32 module math
    cls = jnp.broadcast_to(params['cls'], (Bb, 1, HID))
    return jnp.concatenate([cls, proj], axis=1) + params['pos']


# ------------------------------- parameter init --------------------------------------
def init_params(key):
    k_w, k_cls, k_pos = jax.random.split(key, 3)
    bound = 1.0 / math.sqrt(PD)                 # nn.Linear default init; stored (in,out)
    proj_w = jax.random.uniform(k_w, (PD, HID), jnp.float32, -bound, bound)
    # The module initializes cls_token / positional to zeros; use small random values
    # here so the test actually exercises the cls-row and positional-add paths.
    cls = 0.02 * jax.random.normal(k_cls, (HID,), jnp.float32)
    pos = 0.02 * jax.random.normal(k_pos, (N, HID), jnp.float32)
    return {'proj_w': proj_w, 'cls': cls, 'pos': pos}


# ------------------------------- main -------------------------------------------------
if __name__ == "__main__":
    key = jax.random.PRNGKey(0)
    kp, kx = jax.random.split(key)
    params = init_params(kp)
    x = jax.random.normal(kx, (B, IN_CH, IMG, IMG), jnp.float32)   # NCHW like PyTorch

    out = jax.block_until_ready(embedding_forward(x, params))
    ref = jax.block_until_ready(embedding_reference(x, params))

    assert out.shape == (B, N, HID)
    assert bool(jnp.all(jnp.isfinite(out)))
    # bf16 weights vs f32 reference: error is ~1e-3 RMS, well inside this tolerance.
    np.testing.assert_allclose(np.asarray(out), np.asarray(ref), rtol=2e-2, atol=2e-2)

    print("KERNEL_OK")
</pallas_src>

<mosaic_0001>
module attributes {stable_mosaic.version = 11 : i64} {
  func.func @embedding_kernel(%arg0: i32, %arg1: memref<1x17x48xf32, #tpu.memory_space<vmem>>, %arg2: memref<17x192xf32, #tpu.memory_space<vmem>>, %arg3: memref<48x192xbf16, #tpu.memory_space<vmem>>, %arg4: memref<1x17x192xf32, #tpu.memory_space<vmem>>) attributes {dimension_semantics = [#tpu.dimension_semantics<parallel>], iteration_bounds = array<i64: 2>, scalar_prefetch = 0 : i64, scratch_operands = 0 : i64, tpu.core_type = #tpu.core_type<tc>, window_params = [{transform_indices = @transform_0, window_bounds = array<i64: 1, 17, 48>}, {pipeline_mode = #tpu.pipeline_mode<synchronous>, transform_indices = @transform_1, window_bounds = array<i64: 17, 192>}, {pipeline_mode = #tpu.pipeline_mode<synchronous>, transform_indices = @transform_2, window_bounds = array<i64: 48, 192>}, {transform_indices = @transform_3, window_bounds = array<i64: 1, 17, 192>}]} {
    %c0 = arith.constant 0 : index
    %c0_0 = arith.constant 0 : index
    %0 = vector.load %arg3[%c0, %c0_0] : memref<48x192xbf16, #tpu.memory_space<vmem>>, vector<48x192xbf16>
    %1 = arith.extf %0 : vector<48x192xbf16> to vector<48x192xf32>
    %c0_1 = arith.constant 0 : index
    %c0_2 = arith.constant 0 : index
    %c0_3 = arith.constant 0 : index
    %2 = vector.load %arg1[%c0_1, %c0_2, %c0_3] : memref<1x17x48xf32, #tpu.memory_space<vmem>>, vector<1x17x48xf32>
    %3 = vector.shape_cast %2 : vector<1x17x48xf32> to vector<17x48xf32>
    %cst = arith.constant dense<0.000000e+00> : vector<17x192xf32>
    %4 = tpu.matmul %3, %1, %cst {dimension_numbers = #tpu.dot_dimension_numbers<[1], [0], [0], [1], [0, 0, 1, 1], [], []>} : vector<17x48xf32>, vector<48x192xf32>, vector<17x192xf32> -> vector<17x192xf32>
    %c0_4 = arith.constant 0 : index
    %c0_5 = arith.constant 0 : index
    %5 = vector.load %arg2[%c0_4, %c0_5] : memref<17x192xf32, #tpu.memory_space<vmem>>, vector<17x192xf32>
    %6 = arith.addf %4, %5 : vector<17x192xf32>
    %c0_6 = arith.constant 0 : index
    %c0_7 = arith.constant 0 : index
    %c0_8 = arith.constant 0 : index
    %7 = vector.load %arg4[%c0_6, %c0_7, %c0_8] : memref<1x17x192xf32, #tpu.memory_space<vmem>>, vector<1x17x192xf32>
    %8 = vector.shape_cast %7 : vector<1x17x192xf32> to vector<17x192xf32>
    %9 = vector.shape_cast %6 : vector<17x192xf32> to vector<1x17x192xf32>
    tpu.vector_store %arg4[%c0_6, %c0_7, %c0_8], %9 {strides = array<i32>} : memref<1x17x192xf32, #tpu.memory_space<vmem>>, vector<1x17x192xf32>,
    return
  }
  func.func @transform_0(%arg0: i32) -> (i32, i32, i32) {
    %c0_i32 = arith.constant 0 : i32
    %c0_i32_0 = arith.constant 0 : i32
    %c0_i32_1 = arith.constant 0 : i32
    return %arg0, %c0_i32, %c0_i32_0 : i32, i32, i32
  }
  func.func @transform_1(%arg0: i32) -> (i32, i32) {
    %c0_i32 = arith.constant 0 : i32
    %c0_i32_0 = arith.constant 0 : i32
    %c0_i32_1 = arith.constant 0 : i32
    return %c0_i32, %c0_i32_0 : i32, i32
  }
  func.func @transform_2(%arg0: i32) -> (i32, i32) {
    %c0_i32 = arith.constant 0 : i32
    %c0_i32_0 = arith.constant 0 : i32
    %c0_i32_1 = arith.constant 0 : i32
    return %c0_i32, %c0_i32_0 : i32, i32
  }
  func.func @transform_3(%arg0: i32) -> (i32, i32, i32) {
    %c0_i32 = arith.constant 0 : i32
    %c0_i32_0 = arith.constant 0 : i32
    %c0_i32_1 = arith.constant 0 : i32
    return %arg0, %c0_i32, %c0_i32_0 : i32, i32, i32
  }
}

</mosaic_0001>

<llo_original>
// kernel: tpu_custom_call.1
$region0: #{tpu_custom_call.1}
  #allocation0 [shape = 'u32[]', space=smem, size = 0x4, offset = 0x4, fixed_abs, tag = 'smem constant byte address 0x4 - core index']
  #allocation1 [shape = 'u32[72,128]{1,0:T(1,128)}', space=vmem, size = 0x9000, scoped, tag = 'internal scratch']
  %s0 = inlined_call_operand.vmem [shape: f32[2,17,48], index: 0, kind: input, shape index: {}]
  %s1 = inlined_call_operand.vmem [shape: f32[17,192], index: 1, kind: input, shape index: {}]
  %s2 = inlined_call_operand.hbm [shape: bf16[48,192], index: 2, kind: input, shape index: {}]
  %s3 = inlined_call_operand.vmem [shape: f32[2,17,192], index: 3, kind: output, shape index: {}]
  %s4 = sld [smem:[#allocation0]]
  $region49: #{tpu_custom_call.1} parent=0
    _
  %s6 = ssub.s32 1, %s4
  %s7 = scalar_select 0, %s6, %s4
  $region1: #{tpu_custom_call.1} parent=0
    #allocation2 [shape = 'u8[24576]{0}', space=vmem, size = 0x6000, scoped, tag = 'input window, operand 2, single buffered']
    #allocation3 [shape = 's32[2]{0}', space=sflag, size = 0x8, scoped, tag = 'scoped memory for tpu_custom_call.1']
    %8 = vsyncpa [#allocation3], 0
    loop: start=0, step=1, limit=4
    $region2: #{tpu_custom_call.1} parent=1 // loop_pre_header
      _
    $region3: #{tpu_custom_call.1} parent=1 // loop_header
      %s10 = sphi 0, %s14
      %p11 = scmp.ge.s32.totalorder %s10, 4
      %s20 = sphi 0, %s22
      %s23 = sphi 0, %s20
      %s24 = sphi 0, %s23
      %s40 = sphi 0, %s24
      %s44 = sphi 0, %s44
      %s46 = sphi 0, %s44
      %s47 = sphi 0, %s46
      %s61 = sphi 0, %s47
      %s65 = sphi 0, %s65
      %s67 = sphi 0, %s65
      %s68 = sphi 0, %s67
      %s82 = sphi 0, %s68
      %s88 = sphi 0, %s90
      %s91 = sphi 0, %s88
      %s92 = sphi 0, %s91
      %s108 = sphi 0, %s92
    $region4: #{tpu_custom_call.1} parent=1 // loop_header_branch
      %13 = sbr.rel (%p11) target = $region8
    $region5: #{tpu_custom_call.1} parent=1 // loop_body
      %s15 = ssub.s32 %s10, 1
      %s16 = ssub.s32 %s10, 2
      %s17 = sadd.s32 %s10, 1
      %s18 = ssub.s32 %s10, %s17
      %p19 = scmp.eq.s32.totalorder %s18, 0
      %s21 = sadd.s32 %s20, 1
      %s22 = scalar_select %p19, %s20, %s21
      %p25 = pneg %p19
      %p26 = scmp.eq.s32.totalorder %s10, 1
      %p27 = por %p25, %p26
      %p28 = scmp.ne.s32.totalorder %s20, %s23
      %p29 = scmp.eq.s32.totalorder %s10, 0
      %p30 = por %p28, %p29
      %p31 = scmp.ne.s32.totalorder %s20, %s23
      %p32 = scmp.eq.s32.totalorder %s15, 1
      %p33 = por %p31, %p32
      %p34 = scmp.ne.s32.totalorder %s23, %s24
      %p35 = scmp.eq.s32.totalorder %s15, 0
      %p36 = por %p34, %p35
      %p37 = scmp.ne.s32.totalorder %s23, %s24
      %p38 = scmp.eq.s32.totalorder %s16, 1
      %p39 = por %p37, %p38
      %p41 = scmp.ne.s32.totalorder %s24, %s40
      %p42 = scmp.eq.s32.totalorder %s16, 0
      %p43 = por %p41, %p42
      %s45 = sadd.s32 %s44, 1
      %p48 = scmp.eq.s32.totalorder %s10, 1
      %p49 = scmp.ne.s32.totalorder %s44, %s46
      %p50 = scmp.eq.s32.totalorder %s10, 0
      %p51 = por %p49, %p50
      %p52 = scmp.ne.s32.totalorder %s44, %s46
      %p53 = scmp.eq.s32.totalorder %s15, 1
      %p54 = por %p52, %p53
      %p55 = scmp.ne.s32.totalorder %s46, %s47
      %p56 = scmp.eq.s32.totalorder %s15, 0
      %p57 = por %p55, %p56
      %p58 = scmp.ne.s32.totalorder %s46, %s47
      %p59 = scmp.eq.s32.totalorder %s16, 1
      %p60 = por %p58, %p59
      %p62 = scmp.ne.s32.totalorder %s47, %s61
      %p63 = scmp.eq.s32.totalorder %s16, 0
      %p64 = por %p62, %p63
      %s66 = sadd.s32 %s65, 1
      %p69 = scmp.eq.s32.totalorder %s10, 1
      %p70 = scmp.ne.s32.totalorder %s65, %s67
      %p71 = scmp.eq.s32.totalorder %s10, 0
      %p72 = por %p70, %p71
      %p73 = scmp.ne.s32.totalorder %s65, %s67
      %p74 = scmp.eq.s32.totalorder %s15, 1
      %p75 = por %p73, %p74
      %p76 = scmp.ne.s32.totalorder %s67, %s68
      %p77 = scmp.eq.s32.totalorder %s15, 0
      %p78 = por %p76, %p77
      %p79 = scmp.ne.s32.totalorder %s67, %s68
      %p80 = scmp.eq.s32.totalorder %s16, 1
      %p81 = por %p79, %p80
      %p83 = scmp.ne.s32.totalorder %s68, %s82
      %p84 = scmp.eq.s32.totalorder %s16, 0
      %p85 = por %p83, %p84
      %s86 = ssub.s32 %s10, %s17
      %p87 = scmp.eq.s32.totalorder %s86, 0
      %s89 = sadd.s32 %s88, 1
      %s90 = scalar_select %p87, %s88, %s89
      %p93 = pneg %p87
      %p94 = scmp.eq.s32.totalorder %s10, 1
      %p95 = por %p93, %p94
      %p96 = scmp.ne.s32.totalorder %s88, %s91
      %p97 = scmp.eq.s32.totalorder %s10, 0
      %p98 = por %p96, %p97
      %p99 = scmp.ne.s32.totalorder %s88, %s91
      %p100 = scmp.eq.s32.totalorder %s15, 1
      %p101 = por %p99, %p100
      %p102 = scmp.ne.s32.totalorder %s91, %s92
      %p103 = scmp.eq.s32.totalorder %s15, 0
      %p104 = por %p102, %p103
      %p105 = scmp.ne.s32.totalorder %s91, %s92
      %p106 = scmp.eq.s32.totalorder %s16, 1
      %p107 = por %p105, %p106
      %p109 = scmp.ne.s32.totalorder %s92, %s108
      %p110 = scmp.eq.s32.totalorder %s16, 0
      %p111 = por %p109, %p110
      %p112 = scmp.le.s32.totalorder 1, %s10
      %p113 = scmp.lt.s32.totalorder %s10, 3
      %p114 = pnand %p112, %p113
      %p115 = pneg %p114
      // Predicated region
      $region9: #{tpu_custom_call.1} parent=5 // pred_check
        _
      $region10: #{tpu_custom_call.1} parent=5 // pred_check_branch
        %117 = sbr.rel (%p114) target = $region12
      $region11: #{tpu_custom_call.1} parent=5 // pred_region
        %s118 = ssub.s32 %s10, 1
        // Predicated region
        $region13: #{tpu_custom_call.1} parent=11 // pred_check
          %p119 = pneg %p57
        $region14: #{tpu_custom_call.1} parent=11 // pred_check_branch
          %121 = sbr.rel (%p119) target = $region16
        $region15: #{tpu_custom_call.1} parent=11 // pred_region
          _
        $region16: #{tpu_custom_call.1} parent=11 // pred_fallthru
          _
        // Predicated region
        $region17: #{tpu_custom_call.1} parent=11 // pred_check
          %p122 = pneg %p78
        $region18: #{tpu_custom_call.1} parent=11 // pred_check_branch
          %124 = sbr.rel (%p122) target = $region20
        $region19: #{tpu_custom_call.1} parent=11 // pred_region
          %126 = vsyncadd [#allocation3], 0
          %s127 = sshll.u32 %s2, 4
          %s128 = int_to_ptr.hbm [resolvable:$true] %s127
          %s129 = sshll.u32 [#allocation2], 4
          %s130 = int_to_ptr.vmem [resolvable:$true] %s129
          %135 = dma.hbm_to_vmem [thread:$0]  %s128, 768, %s130, [#allocation3], 128, 128, 8
        $region20: #{tpu_custom_call.1} parent=11 // pred_fallthru
          _
      $region12: #{tpu_custom_call.1} parent=5 // pred_fallthru
        _
      %p136 = scmp.lt.s32.totalorder %s10, 2
      // Predicated region
      $region21: #{tpu_custom_call.1} parent=5 // pred_check
        %p137 = pneg %p136
      $region22: #{tpu_custom_call.1} parent=5 // pred_check_branch
        %139 = sbr.rel (%p137) target = $region24
      $region23: #{tpu_custom_call.1} parent=5 // pred_region
        // Predicated region
        $region25: #{tpu_custom_call.1} parent=23 // pred_check
          %p140 = pneg %p30
        $region26: #{tpu_custom_call.1} parent=23 // pred_check_branch
          %142 = sbr.rel (%p140) target = $region28
        $region27: #{tpu_custom_call.1} parent=23 // pred_region
          %p143 = scmp.lt.s32.totalorder %s10, 1
          %s144 = scalar_select %p143, %s10, 1
          %s145 = smul.addr %s144, 3
          %s146 = smul.addr %s145, 8
          %s147 = scalar_lea.vmem %s0, %s146
        $region28: #{tpu_custom_call.1} parent=23 // pred_fallthru
          _
      $region24: #{tpu_custom_call.1} parent=5 // pred_fallthru
        _
      %p148 = scmp.le.s32.totalorder 1, %s10
      %p149 = scmp.lt.s32.totalorder %s10, 3
      %p150 = pnand %p148, %p149
      %p151 = pneg %p150
      // Predicated region
      $region29: #{tpu_custom_call.1} parent=5 // pred_check
        _
      $region30: #{tpu_custom_call.1} parent=5 // pred_check_branch
        %153 = sbr.rel (%p150) target = $region32
      $region31: #{tpu_custom_call.1} parent=5 // pred_region
        %s154 = ssub.s32 %s10, 1
        // Predicated region
        $region33: #{tpu_custom_call.1} parent=31 // pred_check
          %p155 = pneg %p78
        $region34: #{tpu_custom_call.1} parent=31 // pred_check_branch
          %157 = sbr.rel (%p155) target = $region36
        $region35: #{tpu_custom_call.1} parent=31 // pred_region
          %159 = dma.done [#allocation3], 768
        $region36: #{tpu_custom_call.1} parent=31 // pred_fallthru
          _
        %p160 = scmp.lt.s32.totalorder %s15, 1
        %s161 = scalar_select %p160, %s15, 1
        %s162 = smul.addr %s161, 3
        %s163 = smul.addr %s162, 8
        %s164 = scalar_lea.vmem %s0, %s163
        %p165 = pneg %p36
        %p166 = pneg %p33
        %p167 = pneg %p57
        %p168 = pneg %p54
        %p169 = pneg %p78
        %p170 = pneg %p75
        %p171 = pneg %p104
        %p172 = pneg %p101
        %p173 = scmp.lt.s32.totalorder %s15, 1
        %s174 = scalar_select %p173, %s15, 1
        %s175 = smul.addr %s174, 6
        %s176 = smul.addr %s175, 8
        %s177 = scalar_lea.vmem %s3, %s176
        %p178 = scmp.lt.s32.totalorder %s15, 1
        %s179 = scalar_select %p178, %s15, 1
        %s180 = smul.addr %s179, 3
        %s181 = smul.addr %s180, 8
        %s182 = scalar_lea.vmem %s0, %s181
        %p183 = scmp.lt.s32.totalorder %s15, 1
        %s184 = scalar_select %p183, %s15, 1
        %s185 = smul.addr %s184, 6
        %s186 = smul.addr %s185, 8
        %s187 = scalar_lea.vmem %s3, %s186
        %v188 = vld [vmem:[#allocation2] sm:$0xff]
        %v189 = vld [vmem:[#allocation2 + $0x8] sm:$0xff]
        %v190 = vld [vmem:[#allocation2 + $0x10] sm:$0xff]
        %v191 = vld [vmem:[#allocation2 + $0x18] sm:$0xff]
        %v192 = vld [vmem:[#allocation2 + $0x20] sm:$0xff]
        %v193 = vld [vmem:[#allocation2 + $0x28] sm:$0xff]
        %v194 = vunpack.c.l.bf16 %v188
        %v195 = vunpack.c.h.bf16 %v188
        %v196 = vunpack.c.l.bf16 %v189
        %v197 = vunpack.c.h.bf16 %v189
        %v198 = vunpack.c.l.bf16 %v190
        %v199 = vunpack.c.h.bf16 %v190
        %v200 = vunpack.c.l.bf16 %v191
        %v201 = vunpack.c.h.bf16 %v191
        %v202 = vunpack.c.l.bf16 %v192
        %v203 = vunpack.c.h.bf16 %v192
        %v204 = vunpack.c.l.bf16 %v193
        %v205 = vunpack.c.h.bf16 %v193
        %v206 = vld [vmem:[%s182] sm:$0xff]
        %v207 = vld [vmem:[%s182 + $0x8] sm:$0xff]
        %v208 = vld [vmem:[%s182 + $0x10] sm:$0x1]
        %v209 = vld [vmem:[%s1] sm:$0xff]
        %v210 = vld [vmem:[%s1 + $0x8] sm:$0xff]
        %v211 = vld [vmem:[%s1 + $0x10] sm:$0xff]
        %v212 = vld [vmem:[%s1 + $0x18] sm:$0xff]
        %v213 = vld [vmem:[%s1 + $0x20] sm:$0x1]
        %v214 = vld [vmem:[%s1 + $0x28] sm:$0x1]
        %vm215 = vcmask 392192
        %v217 = vsel %vm215, %v206, 0
        %v220 = vsel %vm215, %v207, 0
        %v223 = vsel %vm215, %v208, 0
        %225 = vmatpush.msra.mxu0 0.0
        %226 = vmatpush.msra.mxu0 0.0
        %227 = vmatpush.msra.mxu0 0.0
        %228 = vmatpush.msra.mxu0 0.0
        %229 = vmatpush.msra.mxu0 0.0
        %230 = vmatpush.msra.mxu0 0.0
        %231 = vmatpush.msra.mxu0 0.0
        %232 = vmatpush.msra.mxu0 0.0
        %233 = vmatpush.msra.mxu0 0.0
        %234 = vmatpush.msra.mxu0 0.0
        %235 = vmatpush.msra.mxu0 %v204
        %236 = vmatpush.msra.mxu0 %v202
        %237 = vmatpush.msra.mxu0 %v200
        %238 = vmatpush.msra.mxu0 %v198
        %239 = vmatpush.msra.mxu0 %v196
        %240 = vmatpush.msra.mxu0 %v194
        %241 = vmatmul.f32.gmra.mxu0 %v217
        %v242 = vpop.f32.mrf.mxu0
        %v243 = vadd.f32 %v209, %v242
        %244 = vmatmul.f32.gmra.mxu0 %v220
        %v245 = vpop.f32.mrf.mxu0
        %v246 = vadd.f32 %v211, %v245
        %247 = vmatmul.f32.gmra.mxu0 %v223
        %v248 = vpop.f32.mrf.mxu0
        %v249 = vadd.f32 %v213, %v248
        %250 = vdwg.mxu0
        %251 = vmatpush.msra.mxu0 0.0
        %252 = vmatpush.msra.mxu0 0.0
        %253 = vmatpush.msra.mxu0 0.0
        %254 = vmatpush.msra.mxu0 0.0
        %255 = vmatpush.msra.mxu0 0.0
        %256 = vmatpush.msra.mxu0 0.0
        %257 = vmatpush.msra.mxu0 0.0
        %258 = vmatpush.msra.mxu0 0.0
        %259 = vmatpush.msra.mxu0 0.0
        %260 = vmatpush.msra.mxu0 0.0
        %261 = vmatpush.msra.mxu0 %v205
        %262 = vmatpush.msra.mxu0 %v203
        %263 = vmatpush.msra.mxu0 %v201
        %264 = vmatpush.msra.mxu0 %v199
        %265 = vmatpush.msra.mxu0 %v197
        %266 = vmatpush.msra.mxu0 %v195
        %267 = vmatmul.f32.gmra.mxu0 %v217
        %v268 = vpop.f32.mrf.mxu0
        %v269 = vadd.f32 %v210, %v268
        %270 = vmatmul.f32.gmra.mxu0 %v220
        %v271 = vpop.f32.mrf.mxu0
        %v272 = vadd.f32 %v212, %v271
        %273 = vmatmul.f32.gmra.mxu0 %v223
        %v274 = vpop.f32.mrf.mxu0
        %v275 = vadd.f32 %v214, %v274
        %276 = vdwg.mxu0
        %277 = vst [vmem:[%s187] sm:$0xff] %v243
        %vm278 = vcmask 523264
        %279 = vst.msk [vmem:[%s187 + $0x8] sm:$0xff] %vm278, %v269
        %280 = vst [vmem:[%s187 + $0x10] sm:$0xff] %v246
        %281 = vst.msk [vmem:[%s187 + $0x18] sm:$0xff] %vm278, %v272
        %282 = vst [vmem:[%s187 + $0x20] sm:$0x1] %v249
        %vm283 = vcmask 516096
        %284 = vst.msk [vmem:[%s187 + $0x28] sm:$0x1] %vm283, %v275
        %p285 = scmp.lt.s32.totalorder %s15, 1
        %s286 = scalar_select %p285, %s15, 1
        %s287 = smul.addr %s286, 6
        %s288 = smul.addr %s287, 8
        %s289 = scalar_lea.vmem %s3, %s288
        // Predicated region
        $region37: #{tpu_custom_call.1} parent=31 // pred_check
          %p290 = pneg %p101
        $region38: #{tpu_custom_call.1} parent=31 // pred_check_branch
          %292 = sbr.rel (%p290) target = $region40
        $region39: #{tpu_custom_call.1} parent=31 // pred_region
          _
        $region40: #{tpu_custom_call.1} parent=31 // pred_fallthru
          _
      $region32: #{tpu_custom_call.1} parent=5 // pred_fallthru
        _
      %p293 = scmp.le.s32.totalorder 2, %s10
      // Predicated region
      $region41: #{tpu_custom_call.1} parent=5 // pred_check
        %p294 = pneg %p293
      $region42: #{tpu_custom_call.1} parent=5 // pred_check_branch
        %296 = sbr.rel (%p294) target = $region44
      $region43: #{tpu_custom_call.1} parent=5 // pred_region
        %s297 = ssub.s32 %s10, 2
        // Predicated region
        $region45: #{tpu_custom_call.1} parent=43 // pred_check
          %p298 = pneg %p107
        $region46: #{tpu_custom_call.1} parent=43 // pred_check_branch
          %300 = sbr.rel (%p298) target = $region48
        $region47: #{tpu_custom_call.1} parent=43 // pred_region
          %p301 = scmp.lt.s32.totalorder %s16, 1
          %s302 = scalar_select %p301, %s16, 1
          %s303 = smul.addr %s302, 6
          %s304 = smul.addr %s303, 8
          %s305 = scalar_lea.vmem %s3, %s304
        $region48: #{tpu_custom_call.1} parent=43 // pred_fallthru
          _
      $region44: #{tpu_custom_call.1} parent=5 // pred_fallthru
        _
    $region6: #{tpu_custom_call.1} parent=1 // loop_footer
      %s14 = sadd.s32 1, %s10
    $region7: #{tpu_custom_call.1} parent=1 // loop_footer_branch
      %9 = sbr.rel target = $region3
    $region8: #{tpu_custom_call.1} parent=1 // loop_exit
      _
    %306 = vsyncpa [#allocation3], 1
    %s307 = scalar_lea.sflag [#allocation3], 1
    %308 = vsyncpa %s307, 1

</llo_original>
